<compile_context>
chip_gen: v5e
topology: v5e:2x2
jax: 0.10.0
libtpu: 0.0.40
codegen_flags: <defaults>
</compile_context>

<pallas_src>
import functools
import math

import jax
import jax.numpy as jnp
from jax.experimental import pallas as pl
from jax.experimental.pallas import tpu as pltpu


# Flip to jnp.bfloat16 for MXU-peak inference; all matmul accumulation and
# layernorm/softmax statistics stay in float32 either way.
COMPUTE_DTYPE = jnp.float32

_NEG_BIG = -1e30  # large-negative mask value (avoids -inf saturation / NaN rows)


# ----------------------------------------------------------------------------
# helpers
# ----------------------------------------------------------------------------
def _tile(dim, target, align):
    """Largest legal tile <= target that evenly divides dim.

    Full-dim blocks are always legal; sub-blocks must be multiples of `align`
    (8 for the sublane axis, 128 for the lane axis).
    """
    if dim <= target:
        return dim
    t = (target // align) * align
    while t >= align:
        if dim % t == 0:
            return t
        t -= align
    return dim  # fall back to full dim (always legal)


# ----------------------------------------------------------------------------
# Pallas kernels
# ----------------------------------------------------------------------------
def _matmul_kernel(x_ref, w_ref, b_ref, o_ref, acc_ref):
    """Tiled y = x @ w + b with f32 VMEM accumulator over the K grid axis."""
    @pl.when(pl.program_id(2) == 0)
    def _():
        acc_ref[...] = jnp.zeros_like(acc_ref)

    acc_ref[...] += jnp.dot(x_ref[...], w_ref[...],
                            preferred_element_type=jnp.float32)

    @pl.when(pl.program_id(2) == pl.num_programs(2) - 1)
    def _():
        o_ref[...] = (acc_ref[...] + b_ref[...].astype(jnp.float32)).astype(o_ref.dtype)


def _lm_head_kernel(x_ref, emb_ref, b_ref, o_ref):
    """logits tile = x @ emb^T + bias, contracting D of the (V,D) embedding.

    No host-side transpose of the tied embedding table; tiled over vocab."""
    y = jax.lax.dot_general(x_ref[...], emb_ref[...],
                            (((1,), (1,)), ((), ())),
                            preferred_element_type=jnp.float32)
    o_ref[...] = (y + b_ref[...].astype(jnp.float32)).astype(o_ref.dtype)


def _add_layernorm_kernel(x_ref, r_ref, g_ref, b_ref, o_ref):
    """LayerNorm(x + residual) — PyTorch semantics (biased var, eps=1e-5)."""
    x = x_ref[...].astype(jnp.float32) + r_ref[...].astype(jnp.float32)
    mean = jnp.mean(x, axis=-1, keepdims=True)
    c = x - mean
    var = jnp.mean(c * c, axis=-1, keepdims=True)
    inv = jax.lax.rsqrt(var + 1e-5)
    o_ref[...] = (c * inv * g_ref[...].astype(jnp.float32)
                  + b_ref[...].astype(jnp.float32)).astype(o_ref.dtype)


def _mha_body(q, k, v, o_ref, *, nhead, scale, causal):
    """All heads for one batch element; merged lane-dense (Sq, D) output."""
    sq, d = q.shape
    sk = k.shape[0]
    hd = d // nhead

    keep = None
    if causal:
        row = jax.lax.broadcasted_iota(jnp.int32, (sq, sk), 0)
        col = jax.lax.broadcasted_iota(jnp.int32, (sq, sk), 1)
        keep = col <= row

    outs = []
    for h in range(nhead):
        sl = slice(h * hd, (h + 1) * hd)
        qh, kh, vh = q[:, sl], k[:, sl], v[:, sl]
        s = jax.lax.dot_general(qh, kh, (((1,), (1,)), ((), ())),
                                preferred_element_type=jnp.float32) * scale
        if causal:
            s = jnp.where(keep, s, _NEG_BIG)
        m = jnp.max(s, axis=-1, keepdims=True)
        p = jnp.exp(s - m)
        l = jnp.sum(p, axis=-1, keepdims=True)
        oh = jnp.dot(p.astype(vh.dtype), vh, preferred_element_type=jnp.float32)
        outs.append(oh * pl.reciprocal(l, approx=True))

    o_ref[0] = jnp.concatenate(outs, axis=-1).astype(o_ref.dtype)


def _self_attn_kernel(qkv_ref, o_ref, *, nhead, scale, causal, d_model):
    qkv = qkv_ref[0]                                  # (S, 3D) — fused QKV proj
    q = qkv[:, :d_model]
    k = qkv[:, d_model:2 * d_model]
    v = qkv[:, 2 * d_model:]
    _mha_body(q, k, v, o_ref, nhead=nhead, scale=scale, causal=causal)


def _cross_attn_kernel(q_ref, kv_ref, o_ref, *, nhead, scale, d_model):
    q = q_ref[0]                                      # (T, D)
    kv = kv_ref[0]                                    # (S, 2D) — fused K|V proj
    k = kv[:, :d_model]
    v = kv[:, d_model:]
    _mha_body(q, k, v, o_ref, nhead=nhead, scale=scale, causal=False)


# ----------------------------------------------------------------------------
# Pallas wrappers
# ----------------------------------------------------------------------------
def linear(x, w, b, *, tm=256, tn=512, tk=512):
    """x: (..., K) @ w: (K, N) + b: (N,) -> (..., N); tiled + pipelined."""
    orig = x.shape
    K = orig[-1]
    N = w.shape[1]
    M = math.prod(orig[:-1])
    tm = _tile(M, tm, 8)
    tn = _tile(N, tn, 128)
    tk = _tile(K, tk, 128)

    out = pl.pallas_call(
        _matmul_kernel,
        out_shape=jax.ShapeDtypeStruct((M, N), x.dtype),
        grid=(M // tm, N // tn, K // tk),
        in_specs=[
            pl.BlockSpec((tm, tk), lambda i, j, k: (i, k)),
            pl.BlockSpec((tk, tn), lambda i, j, k: (k, j)),
            pl.BlockSpec((1, tn), lambda i, j, k: (0, j)),
        ],
        out_specs=pl.BlockSpec((tm, tn), lambda i, j, k: (i, j)),
        scratch_shapes=[pltpu.VMEM((tm, tn), jnp.float32)],
        compiler_params=pltpu.CompilerParams(
            dimension_semantics=("parallel", "parallel", "arbitrary")),
    )(x.reshape(M, K), w, b.reshape(1, N))
    return out.reshape(orig[:-1] + (N,))


def lm_head(x, emb, bias, *, tm=256, tv=2048):
    """Weight-tied LM head: (B,T,D) x (V,D)^T + bias, without transposing emb."""
    B, T, D = x.shape
    V = emb.shape[0]
    M = B * T
    tm = _tile(M, tm, 8)
    tv = _tile(V, tv, 128)

    out = pl.pallas_call(
        _lm_head_kernel,
        out_shape=jax.ShapeDtypeStruct((M, V), x.dtype),
        grid=(M // tm, V // tv),
        in_specs=[
            pl.BlockSpec((tm, D), lambda i, j: (i, 0)),
            pl.BlockSpec((tv, D), lambda i, j: (j, 0)),
            pl.BlockSpec((1, tv), lambda i, j: (0, j)),
        ],
        out_specs=pl.BlockSpec((tm, tv), lambda i, j: (i, j)),
        compiler_params=pltpu.CompilerParams(
            dimension_semantics=("parallel", "parallel")),
    )(x.reshape(M, D), emb, bias.reshape(1, V))
    return out.reshape(B, T, V)


def add_layernorm(x, residual, g, b, *, tm=512):
    """LayerNorm(x + residual); tiled over rows, lane-dense D."""
    orig = x.shape
    D = orig[-1]
    M = math.prod(orig[:-1])
    tm = _tile(M, tm, 8)

    out = pl.pallas_call(
        _add_layernorm_kernel,
        out_shape=jax.ShapeDtypeStruct((M, D), x.dtype),
        grid=(M // tm,),
        in_specs=[
            pl.BlockSpec((tm, D), lambda i: (i, 0)),
            pl.BlockSpec((tm, D), lambda i: (i, 0)),
            pl.BlockSpec((1, D), lambda i: (0, 0)),
            pl.BlockSpec((1, D), lambda i: (0, 0)),
        ],
        out_specs=pl.BlockSpec((tm, D), lambda i: (i, 0)),
        compiler_params=pltpu.CompilerParams(dimension_semantics=("parallel",)),
    )(x.reshape(M, D), residual.reshape(M, D), g.reshape(1, D), b.reshape(1, D))
    return out.reshape(orig)


def self_attention_block(x, p, nhead, causal):
    """Fused QKV projection -> per-batch multi-head attention -> out proj."""
    B, S, D = x.shape
    hd = D // nhead
    qkv = linear(x, p["qkv_w"], p["qkv_b"])            # (B, S, 3D)

    out = pl.pallas_call(
        functools.partial(_self_attn_kernel, nhead=nhead, scale=hd ** -0.5,
                          causal=causal, d_model=D),
        out_shape=jax.ShapeDtypeStruct((B, S, D), x.dtype),
        grid=(B,),
        in_specs=[pl.BlockSpec((1, S, 3 * D), lambda b: (b, 0, 0))],
        out_specs=pl.BlockSpec((1, S, D), lambda b: (b, 0, 0)),
        compiler_params=pltpu.CompilerParams(dimension_semantics=("parallel",)),
    )(qkv)
    return linear(out, p["o_w"], p["o_b"])


def cross_attention_block(y, enc_out, p, nhead):
    """Decoder cross-attention: q from decoder, fused K|V from encoder output."""
    B, T, D = y.shape
    S = enc_out.shape[1]
    hd = D // nhead
    q = linear(y, p["q_w"], p["q_b"])                  # (B, T, D)
    kv = linear(enc_out, p["kv_w"], p["kv_b"])         # (B, S, 2D)

    out = pl.pallas_call(
        functools.partial(_cross_attn_kernel, nhead=nhead, scale=hd ** -0.5,
                          d_model=D),
        out_shape=jax.ShapeDtypeStruct((B, T, D), y.dtype),
        grid=(B,),
        in_specs=[
            pl.BlockSpec((1, T, D), lambda b: (b, 0, 0)),
            pl.BlockSpec((1, S, 2 * D), lambda b: (b, 0, 0)),
        ],
        out_specs=pl.BlockSpec((1, T, D), lambda b: (b, 0, 0)),
        compiler_params=pltpu.CompilerParams(dimension_semantics=("parallel",)),
    )(q, kv)
    return linear(out, p["o_w"], p["o_b"])


# ----------------------------------------------------------------------------
# BART forward (glue in plain JAX; hot paths in Pallas)
# ----------------------------------------------------------------------------
def _ffn(x, layer):
    h = linear(x, layer["fc1_w"], layer["fc1_b"])
    # TODO(synk): exact erf-based GELU kept in plain JAX (erf lowering inside a
    # Mosaic kernel is not guaranteed); matches HF "gelu" activation exactly.
    h = jax.nn.gelu(h.astype(jnp.float32), approximate=False).astype(x.dtype)
    return linear(h, layer["fc2_w"], layer["fc2_b"])


def bart_forward(params, input_ids, decoder_input_ids, cfg):
    nhead = cfg["nhead"]

    # ---------------- encoder ----------------
    B, S = input_ids.shape
    tok = params["shared"][input_ids]                                 # token embed
    pos = jnp.broadcast_to(params["enc_pos"][jnp.arange(S) + 2][None], tok.shape)
    x = add_layernorm(tok, pos, params["enc_ln_emb_g"], params["enc_ln_emb_b"])
    for layer in params["enc_layers"]:
        h = self_attention_block(x, layer["self_attn"], nhead, causal=False)
        x = add_layernorm(h, x, layer["self_ln_g"], layer["self_ln_b"])
        h = _ffn(x, layer)
        x = add_layernorm(h, x, layer["final_ln_g"], layer["final_ln_b"])
    enc_out = x

    # ---------------- decoder ----------------
    T = decoder_input_ids.shape[1]
    tok = params["shared"][decoder_input_ids]
    pos = jnp.broadcast_to(params["dec_pos"][jnp.arange(T) + 2][None], tok.shape)
    y = add_layernorm(tok, pos, params["dec_ln_emb_g"], params["dec_ln_emb_b"])
    for layer in params["dec_layers"]:
        h = self_attention_block(y, layer["self_attn"], nhead, causal=True)
        y = add_layernorm(h, y, layer["self_ln_g"], layer["self_ln_b"])
        h = cross_attention_block(y, enc_out, layer["cross_attn"], nhead)
        y = add_layernorm(h, y, layer["cross_ln_g"], layer["cross_ln_b"])
        h = _ffn(y, layer)
        y = add_layernorm(h, y, layer["final_ln_g"], layer["final_ln_b"])

    # LM head: weight tied to shared embedding (no transpose materialized),
    # plus final_logits_bias (zeros).
    logits = lm_head(y, params["shared"], params["final_logits_bias"])
    return logits.astype(jnp.float32)


# ----------------------------------------------------------------------------
# Deterministic parameter init (synthetic weights, BART-style std=0.02)
# QKV / KV projections are pre-packed into fused matrices — mathematically
# identical to HF's separate q/k/v projections.
# ----------------------------------------------------------------------------
def init_bart_params(key, cfg):
    D, F, V = cfg["d_model"], cfg["ffn_dim"], cfg["vocab_size"]
    keys = iter(jax.random.split(key, 4096))
    std = 0.02
    dt = COMPUTE_DTYPE

    def w(shape):
        return (jax.random.normal(next(keys), shape, jnp.float32) * std).astype(dt)

    def self_attn():
        qw, kw, vw = w((D, D)), w((D, D)), w((D, D))
        return {
            "qkv_w": jnp.concatenate([qw, kw, vw], axis=1),   # (D, 3D)
            "qkv_b": jnp.zeros((3 * D,), dt),
            "o_w": w((D, D)), "o_b": jnp.zeros((D,), dt),
        }

    def cross_attn():
        kw, vw = w((D, D)), w((D, D))
        return {
            "q_w": w((D, D)), "q_b": jnp.zeros((D,), dt),
            "kv_w": jnp.concatenate([kw, vw], axis=1),        # (D, 2D)
            "kv_b": jnp.zeros((2 * D,), dt),
            "o_w": w((D, D)), "o_b": jnp.zeros((D,), dt),
        }

    def enc_layer():
        return {
            "self_attn": self_attn(),
            "self_ln_g": jnp.ones((D,), dt),
            "self_ln_b": jnp.zeros((D,), dt),
            "fc1_w": w((D, F)), "fc1_b": jnp.zeros((F,), dt),
            "fc2_w": w((F, D)), "fc2_b": jnp.zeros((D,), dt),
            "final_ln_g": jnp.ones((D,), dt),
            "final_ln_b": jnp.zeros((D,), dt),
        }

    def dec_layer():
        d = enc_layer()
        d["cross_attn"] = cross_attn()
        d["cross_ln_g"] = jnp.ones((D,), dt)
        d["cross_ln_b"] = jnp.zeros((D,), dt)
        return d

    return {
        "shared": w((V, D)),
        "enc_pos": w((cfg["max_pos"] + 2, D)),   # BartLearnedPositionalEmbedding
        "dec_pos": w((cfg["max_pos"] + 2, D)),
        "enc_ln_emb_g": jnp.ones((D,), dt),
        "enc_ln_emb_b": jnp.zeros((D,), dt),
        "dec_ln_emb_g": jnp.ones((D,), dt),
        "dec_ln_emb_b": jnp.zeros((D,), dt),
        "enc_layers": [enc_layer() for _ in range(cfg["enc_layers"])],
        "dec_layers": [dec_layer() for _ in range(cfg["dec_layers"])],
        "final_logits_bias": jnp.zeros((V,), dt),
    }


# ----------------------------------------------------------------------------
if __name__ == "__main__":
    cfg = dict(
        vocab_size=128,   # config.vocab_size
        d_model=32,       # config.embedding_size
        nhead=4,          # config.nhead
        ffn_dim=64,       # config.hidden_dim
        enc_layers=2,     # config.num_encoder_layers
        dec_layers=2,     # config.num_decoder_layers
        max_pos=16,       # config.maximum_sequence_length
    )

    key = jax.random.PRNGKey(0)
    pkey, ikey, dkey = jax.random.split(key, 3)
    params = init_bart_params(pkey, cfg)

    B, S = 2, 8
    input_ids = jax.random.randint(ikey, (B, S), 0, cfg["vocab_size"], dtype=jnp.int32)
    decoder_input_ids = jax.random.randint(dkey, (B, S), 0, cfg["vocab_size"], dtype=jnp.int32)

    logits = bart_forward(params, input_ids, decoder_input_ids, cfg)
    logits = jax.block_until_ready(logits)

    assert logits.shape == (B, S, cfg["vocab_size"])
    assert logits.dtype == jnp.float32
    assert bool(jnp.all(jnp.isfinite(logits)))
    print("KERNEL_OK")
</pallas_src>

<mosaic_0001>
module attributes {stable_mosaic.version = 11 : i64} {
  func.func @_add_layernorm_kernel(%arg0: i32, %arg1: memref<16x32xf32, #tpu.memory_space<vmem>>, %arg2: memref<16x32xf32, #tpu.memory_space<vmem>>, %arg3: memref<1x32xf32, #tpu.memory_space<vmem>>, %arg4: memref<1x32xf32, #tpu.memory_space<vmem>>, %arg5: memref<16x32xf32, #tpu.memory_space<vmem>>) attributes {dimension_semantics = [#tpu.dimension_semantics<parallel>], iteration_bounds = array<i64: 1>, scalar_prefetch = 0 : i64, scratch_operands = 0 : i64, tpu.core_type = #tpu.core_type<tc>, window_params = [{transform_indices = @transform_0, window_bounds = array<i64: 16, 32>}, {transform_indices = @transform_1, window_bounds = array<i64: 16, 32>}, {pipeline_mode = #tpu.pipeline_mode<synchronous>, transform_indices = @transform_2, window_bounds = array<i64: 1, 32>}, {pipeline_mode = #tpu.pipeline_mode<synchronous>, transform_indices = @transform_3, window_bounds = array<i64: 1, 32>}, {transform_indices = @transform_4, window_bounds = array<i64: 16, 32>}]} {
    %c0 = arith.constant 0 : index
    %c0_0 = arith.constant 0 : index
    %0 = vector.load %arg1[%c0, %c0_0] : memref<16x32xf32, #tpu.memory_space<vmem>>, vector<16x32xf32>
    %c0_1 = arith.constant 0 : index
    %c0_2 = arith.constant 0 : index
    %1 = vector.load %arg2[%c0_1, %c0_2] : memref<16x32xf32, #tpu.memory_space<vmem>>, vector<16x32xf32>
    %2 = arith.addf %0, %1 : vector<16x32xf32>
    %cst = arith.constant dense<0.000000e+00> : vector<16xf32>
    %3 = vector.multi_reduction <add>, %2, %cst [1] : vector<16x32xf32> to vector<16xf32>
    %4 = vector.shape_cast %3 : vector<16xf32> to vector<16x1xf32>
    %cst_3 = arith.constant 3.200000e+01 : f32
    %5 = vector.broadcast %cst_3 : f32 to vector<16x1xf32>
    %6 = arith.divf %4, %5 : vector<16x1xf32>
    %7 = vector.broadcast %6 : vector<16x1xf32> to vector<16x32xf32>
    %8 = arith.subf %2, %7 : vector<16x32xf32>
    %9 = arith.mulf %8, %8 : vector<16x32xf32>
    %cst_4 = arith.constant dense<0.000000e+00> : vector<16xf32>
    %10 = vector.multi_reduction <add>, %9, %cst_4 [1] : vector<16x32xf32> to vector<16xf32>
    %11 = vector.shape_cast %10 : vector<16xf32> to vector<16x1xf32>
    %cst_5 = arith.constant 3.200000e+01 : f32
    %12 = vector.broadcast %cst_5 : f32 to vector<16x1xf32>
    %13 = arith.divf %11, %12 : vector<16x1xf32>
    %cst_6 = arith.constant 9.99999974E-6 : f32
    %14 = vector.broadcast %cst_6 : f32 to vector<16x1xf32>
    %15 = arith.addf %13, %14 : vector<16x1xf32>
    %16 = math.rsqrt %15 : vector<16x1xf32>
    %17 = vector.broadcast %16 : vector<16x1xf32> to vector<16x32xf32>
    %18 = arith.mulf %8, %17 : vector<16x32xf32>
    %c0_7 = arith.constant 0 : index
    %c0_8 = arith.constant 0 : index
    %19 = vector.load %arg3[%c0_7, %c0_8] : memref<1x32xf32, #tpu.memory_space<vmem>>, vector<1x32xf32>
    %20 = vector.broadcast %19 : vector<1x32xf32> to vector<16x32xf32>
    %21 = arith.mulf %18, %20 : vector<16x32xf32>
    %c0_9 = arith.constant 0 : index
    %c0_10 = arith.constant 0 : index
    %22 = vector.load %arg4[%c0_9, %c0_10] : memref<1x32xf32, #tpu.memory_space<vmem>>, vector<1x32xf32>
    %23 = vector.broadcast %22 : vector<1x32xf32> to vector<16x32xf32>
    %24 = arith.addf %21, %23 : vector<16x32xf32>
    %c0_11 = arith.constant 0 : index
    %c0_12 = arith.constant 0 : index
    %25 = vector.load %arg5[%c0_11, %c0_12] : memref<16x32xf32, #tpu.memory_space<vmem>>, vector<16x32xf32>
    tpu.vector_store %arg5[%c0_11, %c0_12], %24 {strides = array<i32>} : memref<16x32xf32, #tpu.memory_space<vmem>>, vector<16x32xf32>,
    return
  }
  func.func @transform_0(%arg0: i32) -> (i32, i32) {
    %c0_i32 = arith.constant 0 : i32
    %c0_i32_0 = arith.constant 0 : i32
    return %arg0, %c0_i32 : i32, i32
  }
  func.func @transform_1(%arg0: i32) -> (i32, i32) {
    %c0_i32 = arith.constant 0 : i32
    %c0_i32_0 = arith.constant 0 : i32
    return %arg0, %c0_i32 : i32, i32
  }
  func.func @transform_2(%arg0: i32) -> (i32, i32) {
    %c0_i32 = arith.constant 0 : i32
    %c0_i32_0 = arith.constant 0 : i32
    %c0_i32_1 = arith.constant 0 : i32
    return %c0_i32, %c0_i32_0 : i32, i32
  }
  func.func @transform_3(%arg0: i32) -> (i32, i32) {
    %c0_i32 = arith.constant 0 : i32
    %c0_i32_0 = arith.constant 0 : i32
    %c0_i32_1 = arith.constant 0 : i32
    return %c0_i32, %c0_i32_0 : i32, i32
  }
  func.func @transform_4(%arg0: i32) -> (i32, i32) {
    %c0_i32 = arith.constant 0 : i32
    %c0_i32_0 = arith.constant 0 : i32
    return %arg0, %c0_i32 : i32, i32
  }
}

</mosaic_0001>

<llo_original>
// kernel: tpu_custom_call.1
$region0: #{tpu_custom_call.1}
  #allocation0 [shape = 'u32[]', space=smem, size = 0x4, offset = 0x4, fixed_abs, tag = 'smem constant byte address 0x4 - core index']
  #allocation1 [shape = 'u32[72,128]{1,0:T(1,128)}', space=vmem, size = 0x9000, scoped, tag = 'internal scratch']
  %s0 = inlined_call_operand.hbm [shape: f32[16,32], index: 0, kind: input, shape index: {}]
  %s1 = inlined_call_operand.hbm [shape: f32[16,32], index: 1, kind: input, shape index: {}]
  %s2 = inlined_call_operand.vmem [shape: f32[1,32], index: 2, kind: input, shape index: {}]
  %s3 = inlined_call_operand.vmem [shape: f32[1,32], index: 3, kind: input, shape index: {}]
  %s4 = inlined_call_operand.hbm [shape: f32[16,32], index: 4, kind: output, shape index: {}]
  %s5 = sld [smem:[#allocation0]]
  $region34: #{tpu_custom_call.1} parent=0
    _
  %s7 = ssub.s32 1, %s5
  %s8 = scalar_select 0, %s7, %s5
  $region1: #{tpu_custom_call.1} parent=0
    #allocation2 [shape = 'u8[8192]{0}', space=vmem, size = 0x2000, scoped, tag = 'input window, operand 0, single buffered']
    #allocation3 [shape = 's32[1]{0}', space=sflag, size = 0x4, scoped, tag = 'scoped memory for tpu_custom_call.1']
    #allocation4 [shape = 's32[1]{0}', space=sflag, size = 0x4, scoped, tag = 'scoped memory for tpu_custom_call.1']
    #allocation5 [shape = 'u8[8192]{0}', space=vmem, size = 0x2000, scoped, tag = 'input window, operand 1, single buffered']
    #allocation6 [shape = 's32[1]{0}', space=sflag, size = 0x4, scoped, tag = 'scoped memory for tpu_custom_call.1']
    #allocation7 [shape = 'u8[8192]{0}', space=vmem, size = 0x2000, scoped, tag = 'output window, operand 0, single buffered']
    %9 = vsyncpa [#allocation3], 0
    %10 = vsyncpa [#allocation6], 0
    %11 = vsyncpa [#allocation4], 0
    // Predicated region
    $region2: #{tpu_custom_call.1} parent=1 // pred_check
      _
    $region3: #{tpu_custom_call.1} parent=1 // pred_check_branch
      %13 = sbr.rel (0) target = $region5
    $region4: #{tpu_custom_call.1} parent=1 // pred_region
      %15 = vsyncadd [#allocation3], 0
      %s16 = sshll.u32 %s0, 4
      %s17 = int_to_ptr.hbm [resolvable:$true] %s16
      %s18 = sshll.u32 [#allocation2], 4
      %s19 = int_to_ptr.vmem [resolvable:$true] %s18
      %24 = dma.hbm_to_vmem [thread:$0]  %s17, 256, %s19, [#allocation3], 128, 128, 8
    $region5: #{tpu_custom_call.1} parent=1 // pred_fallthru
      _
    // Predicated region
    $region6: #{tpu_custom_call.1} parent=1 // pred_check
      _
    $region7: #{tpu_custom_call.1} parent=1 // pred_check_branch
      %26 = sbr.rel (0) target = $region9
    $region8: #{tpu_custom_call.1} parent=1 // pred_region
      %28 = vsyncadd [#allocation6], 0
      %s29 = sshll.u32 %s1, 4
      %s30 = int_to_ptr.hbm [resolvable:$true] %s29
      %s31 = sshll.u32 [#allocation5], 4
      %s32 = int_to_ptr.vmem [resolvable:$true] %s31
      %37 = dma.hbm_to_vmem [thread:$0]  %s30, 256, %s32, [#allocation6], 128, 128, 8
    $region9: #{tpu_custom_call.1} parent=1 // pred_fallthru
      _
    // Predicated region
    $region10: #{tpu_custom_call.1} parent=1 // pred_check
      _
    $region11: #{tpu_custom_call.1} parent=1 // pred_check_branch
      %39 = sbr.rel (0) target = $region13
    $region12: #{tpu_custom_call.1} parent=1 // pred_region
      _
    $region13: #{tpu_custom_call.1} parent=1 // pred_fallthru
      _
    // Predicated region
    $region14: #{tpu_custom_call.1} parent=1 // pred_check
      _
    $region15: #{tpu_custom_call.1} parent=1 // pred_check_branch
      %41 = sbr.rel (0) target = $region17
    $region16: #{tpu_custom_call.1} parent=1 // pred_region
      _
    $region17: #{tpu_custom_call.1} parent=1 // pred_fallthru
      _
    // Predicated region
    $region18: #{tpu_custom_call.1} parent=1 // pred_check
      _
    $region19: #{tpu_custom_call.1} parent=1 // pred_check_branch
      %43 = sbr.rel (0) target = $region21
    $region20: #{tpu_custom_call.1} parent=1 // pred_region
      %45 = dma.done [#allocation3], 256
    $region21: #{tpu_custom_call.1} parent=1 // pred_fallthru
      _
    // Predicated region
    $region22: #{tpu_custom_call.1} parent=1 // pred_check
      _
    $region23: #{tpu_custom_call.1} parent=1 // pred_check_branch
      %47 = sbr.rel (0) target = $region25
    $region24: #{tpu_custom_call.1} parent=1 // pred_region
      %49 = dma.done [#allocation6], 256
    $region25: #{tpu_custom_call.1} parent=1 // pred_fallthru
      _
    %v50 = vld [vmem:[#allocation2] sm:$0xff]
    %v51 = vld [vmem:[#allocation2 + $0x8] sm:$0xff]
    %v52 = vld [vmem:[#allocation5] sm:$0xff]
    %v53 = vld [vmem:[#allocation5 + $0x8] sm:$0xff]
    %v54 = vadd.f32 %v50, %v52
    %v55 = vadd.f32 %v51, %v53
    %vm56 = vcmask 261120
    %v57 = vsel %vm56, %v54, 0.0
    %58 = vadd.xlane.f32.xlu0 %v57
    %v59 = vpop.xlane.xlu0 %58
    %v60 = vsel %vm56, %v55, 0.0
    %61 = vadd.xlane.f32.xlu0 %v60
    %v62 = vpop.xlane.xlu0 %61
    %v63 = vrcp.pop 32.0
    %v64 = vmul.f32 32.0, %v63
    %v65 = vsub.f32 1.0, %v64
    %v66 = vmul.f32 %v63, %v65
    %v67 = vadd.f32 %v63, %v66
    %vm68 = vweird.f32 %v63
    %v69 = vsel %vm68, %v63, %v67
    %v70 = vmul.f32 %v59, %v69
    %v71 = vmul.f32 %v62, %v69
    %v72 = vsub.f32 %v54, %v70
    %v73 = vsub.f32 %v55, %v71
    %v74 = vmul.f32 %v72, %v72
    %v75 = vmul.f32 %v73, %v73
    %v76 = vsel %vm56, %v74, 0.0
    %77 = vadd.xlane.f32.xlu0 %v76
    %v78 = vpop.xlane.xlu0 %77
    %v79 = vsel %vm56, %v75, 0.0
    %80 = vadd.xlane.f32.xlu0 %v79
    %v81 = vpop.xlane.xlu0 %80
    %v82 = vmul.f32 %v78, %v69
    %v83 = vmul.f32 %v81, %v69
    %v84 = vadd.f32 %v82, 1e-05
    %v85 = vadd.f32 %v83, 1e-05
    %v86 = vrsqrt.pop %v84
    %v87 = vmul.f32 %v86, %v84
    %v88 = vmul.f32 %v87, %v86
    %v89 = vmul.f32 0.5, %v88
    %v90 = vsub.f32 1.5, %v89
    %v91 = vmul.f32 %v86, %v90
    %vm92 = vweird.f32 %v84
    %vm93 = vweird.f32 %v86
    %vm94 = vmor %vm92, %vm93
    %v95 = vsel %vm94, %v86, %v91
    %v96 = vrsqrt.pop %v85
    %v97 = vmul.f32 %v96, %v85
    %v98 = vmul.f32 %v97, %v96
    %v99 = vmul.f32 0.5, %v98
    %v100 = vsub.f32 1.5, %v99
    %v101 = vmul.f32 %v96, %v100
    %vm102 = vweird.f32 %v85
    %vm103 = vweird.f32 %v96
    %vm104 = vmor %vm102, %vm103
    %v105 = vsel %vm104, %v96, %v101
    %v106 = vmul.f32 %v72, %v95
    %v107 = vmul.f32 %v73, %v105
    %v108 = vld [vmem:[%s2] sm:$0x1]
    %v110 = vperm.slane %v108, 0
    %v112 = vmul.f32 %v106, %v110
    %v113 = vmul.f32 %v107, %v110
    %v114 = vld [vmem:[%s3] sm:$0x1]
    %v116 = vperm.slane %v114, 0
    %v118 = vadd.f32 %v112, %v116
    %v119 = vadd.f32 %v113, %v116
    %120 = vst.msk [vmem:[#allocation7] sm:$0xff] %vm56, %v118
    %121 = vst.msk [vmem:[#allocation7 + $0x8] sm:$0xff] %vm56, %v119
    // Predicated region
    $region26: #{tpu_custom_call.1} parent=1 // pred_check
      _
    $region27: #{tpu_custom_call.1} parent=1 // pred_check_branch
      %123 = sbr.rel (0) target = $region29
    $region28: #{tpu_custom_call.1} parent=1 // pred_region
      %125 = vsyncadd [#allocation4], 0
      %s126 = sshll.u32 [#allocation7], 4
      %s127 = int_to_ptr.vmem [resolvable:$true] %s126
      %s128 = sshll.u32 %s4, 4
      %s129 = int_to_ptr.hbm [resolvable:$true] %s128
      %134 = dma.vmem_to_hbm [thread:$0]  %s127, 256, %s129, [#allocation4], 128, 128, 8
    $region29: #{tpu_custom_call.1} parent=1 // pred_fallthru
      _
    // Predicated region
    $region30: #{tpu_custom_call.1} parent=1 // pred_check
      _
    $region31: #{tpu_custom_call.1} parent=1 // pred_check_branch
      %136 = sbr.rel (0) target = $region33
    $region32: #{tpu_custom_call.1} parent=1 // pred_region
      %138 = dma.done [#allocation4], 256
    $region33: #{tpu_custom_call.1} parent=1 // pred_fallthru
      _
    %139 = vsyncpa [#allocation3], 1
    %140 = vsyncpa [#allocation6], 1
    %141 = vsyncpa [#allocation4], 1

</llo_original>
